<compile_context>
chip_gen: v5e
topology: v5e:2x2
jax: 0.10.0
libtpu: 0.0.40
codegen_flags: <defaults>
</compile_context>

<pallas_src>
import functools

import numpy as np
import jax
import jax.numpy as jnp
from jax.experimental import pallas as pl
from jax.experimental.pallas import tpu as pltpu


# ---------------------------------------------------------------------------
# Host-side helpers: pooling / interpolation matrices (numpy, shape-only)
# ---------------------------------------------------------------------------
def adaptive_pool_matrix(in_size: int, out_size: int) -> np.ndarray:
    """P[i, j] such that pooled[i] = sum_j P[i, j] * x[j] (PyTorch AdaptiveAvgPool)."""
    P = np.zeros((out_size, in_size), np.float32)
    for i in range(out_size):
        start = int(np.floor(i * in_size / out_size))
        end = int(np.ceil((i + 1) * in_size / out_size))
        P[i, start:end] = 1.0 / (end - start)
    return P


def interp_matrix(out_size: int, in_size: int) -> np.ndarray:
    """W[d, i] for 1-D linear interpolation, align_corners=True (matches module)."""
    W = np.zeros((out_size, in_size), np.float32)
    if in_size == 1 or out_size == 1:
        if in_size == 1:
            W[:, 0] = 1.0
        else:
            W[0, 0] = 1.0
        return W
    for d in range(out_size):
        src = d * (in_size - 1) / (out_size - 1)
        i0 = min(int(np.floor(src)), in_size - 1)
        i1 = min(i0 + 1, in_size - 1)
        f = src - i0
        W[d, i0] += 1.0 - f
        W[d, i1] += f
    return W


def _round_up(x: int, m: int) -> int:
    return -(-x // m) * m


@functools.lru_cache(maxsize=None)
def _static_matrices(D, H, W, pool_sizes, r_pad):
    """Cached, shape-only: PoolCatT [R, Pcat], padded WcatT [Pcat_pad, r_pad]."""
    R = D * H * W
    pool_parts, up_parts, offsets = [], [], [0]
    for ps in pool_sizes:
        Pd, Ph, Pw = (adaptive_pool_matrix(n, ps) for n in (D, H, W))
        # pooled[(i,j,k)] = sum_{d,h,w} Pd[i,d] Ph[j,h] Pw[k,w] * x[(d,h,w)]
        pool_parts.append(
            np.einsum("id,jh,kw->dhwijk", Pd, Ph, Pw).reshape(R, ps ** 3))
        Id, Ih, Iw = interp_matrix(D, ps), interp_matrix(H, ps), interp_matrix(W, ps)
        # up[(i,j,k),(d,h,w)] = Id[d,i] Ih[h,j] Iw[w,k]
        up_parts.append(
            np.einsum("di,hj,wk->ijkdhw", Id, Ih, Iw).reshape(ps ** 3, R))
        offsets.append(offsets[-1] + ps ** 3)
    poolcatT = np.concatenate(pool_parts, axis=1).astype(np.float32)   # (R, Pcat)
    wcatT = np.concatenate(up_parts, axis=0).astype(np.float32)        # (Pcat, R)
    Pcat = wcatT.shape[0]
    Pcat_pad = _round_up(Pcat, 128)                                    # 252 -> 256
    wcatT_pad = np.zeros((Pcat_pad, r_pad), np.float32)
    wcatT_pad[:Pcat, :R] = wcatT
    return poolcatT, wcatT_pad, tuple(offsets), Pcat, Pcat_pad


@functools.lru_cache(maxsize=None)
def _device_matrices(D, H, W, pool_sizes, r_pad, compute_dtype_name):
    """Device-resident copies cached across calls (keyed on shape only)."""
    poolcatT, wcatT_pad, offsets, Pcat, Pcat_pad = _static_matrices(
        D, H, W, pool_sizes, r_pad)
    return (jnp.asarray(poolcatT),                                        # f32
            jnp.asarray(wcatT_pad, dtype=jnp.dtype(compute_dtype_name)),  # bf16
            offsets, Pcat, Pcat_pad)


def _tile_bytes(shape, dtype):
    """(8,128)-tile-aligned VMEM footprint of one block."""
    itemsize = jnp.dtype(dtype).itemsize
    dims = list(shape)
    if len(dims) >= 1:
        dims[-1] = _round_up(dims[-1], 128)
    if len(dims) >= 2:
        sub = 8 if itemsize >= 4 else (16 if itemsize == 2 else 32)
        dims[-2] = _round_up(dims[-2], sub)
    n = 1
    for d in dims:
        n *= int(d)
    return n * itemsize


# ---------------------------------------------------------------------------
# Pallas kernel: out[C, TM] = wb_x @ x + GcatT[b] @ WcatT_tile + bias
# ---------------------------------------------------------------------------
def _ppm_kernel(batch_axis, gcat_resident, compute_dtype,
                x_ref, wcatT_ref, gcatT_ref, wbx_ref, bias_ref, o_ref):
    # In-kernel cast (VPU work hidden under DMA) instead of a wrapper convert.
    x = x_ref[0].astype(compute_dtype)                       # (C, TM)
    if gcat_resident:
        g = gcatT_ref[pl.program_id(batch_axis)]             # (C, Pcat_pad), VMEM-resident
    else:
        g = gcatT_ref[0]
    # identity branch of the channel concat + bottleneck 1x1x1 conv
    acc = jnp.dot(wbx_ref[...], x, preferred_element_type=jnp.float32)
    # all pyramid stages fused into one K = Pcat_pad matmul
    acc = acc + jnp.dot(g, wcatT_ref[...], preferred_element_type=jnp.float32)
    o_ref[0] = (acc + bias_ref[...]).astype(o_ref.dtype)


def pyramid_pooling_3d(x, wc_list, wb, bias, pool_sizes=(1, 2, 3, 6),
                       tm=1024, compute_dtype=jnp.bfloat16,
                       out_dtype=jnp.bfloat16):
    """x: [N, C, D, H, W] (NCDHW). wc_list[s]: [Cout, C], wb: [C, C + n*Cout],
    bias: [C]. Returns [N, C, D, H, W] in out_dtype."""
    N, C, D, H, W = x.shape
    n_stages = len(pool_sizes)
    Cout = C // n_stages
    R = D * H * W

    TM = int(min(tm, _round_up(R, 128)))
    num_tiles = -(-R // TM)
    R_pad = num_tiles * TM

    poolcatT, wcatT, offsets, Pcat, Pcat_pad = _device_matrices(
        D, H, W, tuple(pool_sizes), R_pad, jnp.dtype(compute_dtype).name)

    # ---- single pooling pass over x (one matmul instead of 4 einsum passes) --
    x_cf = x.reshape(N, C, R)                                  # free reshape, f32
    pooled_all = jnp.einsum("ncr,rp->ncp", x_cf, poolcatT)     # (N, C, Pcat)

    # ---- per-stage 1x1x1 conv + ReLU + bottleneck slice (tiny; stays in XLA) -
    gcat_parts = []
    for s, _ in enumerate(pool_sizes):
        p0, p1 = offsets[s], offsets[s + 1]
        feat = jnp.maximum(
            jnp.einsum("oc,ncp->nop", wc_list[s], pooled_all[:, :, p0:p1]), 0.0)
        wb_s = wb[:, C + s * Cout:C + (s + 1) * Cout]          # (C, Cout)
        gcat_parts.append(jnp.einsum("oq,nqp->nop", wb_s, feat))
    gcatT = jnp.concatenate(gcat_parts, axis=2)                # (N, C, Pcat)
    gcatT = jnp.pad(gcatT, ((0, 0), (0, 0), (0, Pcat_pad - Pcat)))
    gcatT = gcatT.astype(compute_dtype)

    wb_x = wb[:, :C].astype(compute_dtype)                     # (C, C)
    bias2d = bias.reshape(C, 1).astype(jnp.float32)

    # ragged voxel count: zero-pad (padded columns only pick up the bias and
    # are sliced off afterwards)
    x_pal = x_cf if R_pad == R else jnp.pad(x_cf, ((0, 0), (0, 0), (0, R_pad - R)))

    # ---- grid / specs --------------------------------------------------------
    gcat_resident = N * C * Pcat_pad * jnp.dtype(compute_dtype).itemsize <= (8 << 20)
    batch_major = num_tiles < 2        # keep leading parallel axis >= 2 (v7x megacore)
    if batch_major:
        grid = (N, num_tiles)
        batch_axis = 0
        to_tb = lambda b, t: (t, b)
    else:
        grid = (num_tiles, N)          # batch innermost: WcatT tile reused over batch
        batch_axis = 1
        to_tb = lambda t, b: (t, b)

    x_map = lambda *g: (to_tb(*g)[1], 0, to_tb(*g)[0])
    w_map = lambda *g: (0, to_tb(*g)[0])
    const2 = lambda *g: (0, 0)
    const3 = lambda *g: (0, 0, 0)

    if gcat_resident:
        # grid-invariant: fetched once, whole (N, C, Pcat_pad) stays in VMEM
        g_spec = pl.BlockSpec((N, C, Pcat_pad), const3)
    else:
        g_spec = pl.BlockSpec((1, C, Pcat_pad), lambda *g: (to_tb(*g)[1], 0, 0))

    # ---- VMEM budget from actual block sizes (double-buffered) + margin ------
    blocks = [((1, C, TM), x.dtype),
              ((Pcat_pad, TM), compute_dtype),
              ((N if gcat_resident else 1, C, Pcat_pad), compute_dtype),
              ((C, C), compute_dtype),
              ((C, 1), jnp.float32),
              ((1, C, TM), out_dtype)]
    vmem_bytes = 2 * sum(_tile_bytes(s, d) for s, d in blocks) + (4 << 20)
    vmem_bytes = int(max(vmem_bytes, 16 << 20))

    kernel = functools.partial(_ppm_kernel, batch_axis, gcat_resident, compute_dtype)

    out = pl.pallas_call(
        kernel,
        out_shape=jax.ShapeDtypeStruct((N, C, R_pad), out_dtype),
        grid_spec=pltpu.PrefetchScalarGridSpec(
            num_scalar_prefetch=0,
            grid=grid,
            in_specs=[
                pl.BlockSpec((1, C, TM), x_map),        # x tile (f32, cast in-kernel)
                pl.BlockSpec((Pcat_pad, TM), w_map),    # fused trilinear-upsample weights
                g_spec,                                 # per-batch fused stage features
                pl.BlockSpec((C, C), const2),           # bottleneck (identity branch)
                pl.BlockSpec((C, 1), const2),           # bottleneck bias
            ],
            out_specs=pl.BlockSpec((1, C, TM), x_map),
        ),
        compiler_params=pltpu.CompilerParams(
            dimension_semantics=("parallel", "parallel"),
            vmem_limit_bytes=vmem_bytes),
    )(x_pal, wcatT, gcatT, wb_x, bias2d)

    if R_pad != R:
        out = out[:, :, :R]
    return out.reshape(N, C, D, H, W)


# ---------------------------------------------------------------------------
# Pure-JAX reference mirroring the PyTorch module (f32, no fusion)
# ---------------------------------------------------------------------------
def reference(x, wc_list, wb, bias, pool_sizes=(1, 2, 3, 6)):
    N, C, D, H, W = x.shape
    feats = [x]
    for s, ps in enumerate(pool_sizes):
        Pd, Ph, Pw = (adaptive_pool_matrix(n, ps) for n in (D, H, W))
        pooled = jnp.einsum("ncdhw,id,jh,kw->ncijk", x, Pd, Ph, Pw)
        conv = jnp.maximum(jnp.einsum("oc,ncijk->noijk", wc_list[s], pooled), 0.0)
        Id, Ih, Iw = (interp_matrix(o, ps) for o in (D, H, W))
        up = jnp.einsum("noijk,di,hj,wk->nodhw", conv, Id, Ih, Iw)
        feats.append(up)
    cat = jnp.concatenate(feats, axis=1)
    out = jnp.einsum("oc,ncdhw->nodhw", wb, cat) + bias.reshape(1, C, 1, 1, 1)
    return out


if __name__ == "__main__":
    key = jax.random.PRNGKey(0)
    N, C, D, H, W = 2, 16, 8, 8, 8            # small synthetic shapes
    pool_sizes = (1, 2, 3, 6)
    n_stages = len(pool_sizes)
    Cout = C // n_stages
    Ctot = C + Cout * n_stages

    k_x, k_wc, k_wb, k_b = jax.random.split(key, 4)
    x = jax.random.normal(k_x, (N, C, D, H, W), jnp.float32)
    # synthetic parameters in native PyTorch conv-weight orientation [out, in]
    wc_list = [
        jax.random.normal(jax.random.fold_in(k_wc, s), (Cout, C), jnp.float32) * 0.1
        for s in range(n_stages)
    ]
    wb = jax.random.normal(k_wb, (C, Ctot), jnp.float32) * 0.1    # bottleneck weight
    bias = jax.random.normal(k_b, (C,), jnp.float32) * 0.1        # bottleneck bias

    out = jax.block_until_ready(pyramid_pooling_3d(x, wc_list, wb, bias, pool_sizes))
    ref = jax.block_until_ready(reference(x, wc_list, wb, bias, pool_sizes))

    assert out.shape == (N, C, D, H, W)
    out_f32 = np.asarray(out.astype(jnp.float32))
    assert np.all(np.isfinite(out_f32))
    # bf16 inputs + bf16 output vs f32 reference
    np.testing.assert_allclose(out_f32, np.asarray(ref), rtol=3e-2, atol=3e-2)

    print("KERNEL_OK")
</pallas_src>

<mosaic_0001>
module attributes {stable_mosaic.version = 11 : i64} {
  func.func @_ppm_kernel(%arg0: i32, %arg1: i32, %arg2: memref<1x16x512xf32, #tpu.memory_space<vmem>>, %arg3: memref<256x512xbf16, #tpu.memory_space<vmem>>, %arg4: memref<2x16x256xbf16, #tpu.memory_space<vmem>>, %arg5: memref<16x16xbf16, #tpu.memory_space<vmem>>, %arg6: memref<16x1xf32, #tpu.memory_space<vmem>>, %arg7: memref<1x16x512xbf16, #tpu.memory_space<vmem>>) attributes {dimension_semantics = [#tpu.dimension_semantics<parallel>, #tpu.dimension_semantics<parallel>], iteration_bounds = array<i64: 2, 1>, scalar_prefetch = 0 : i64, scratch_operands = 0 : i64, tpu.core_type = #tpu.core_type<tc>, window_params = [{transform_indices = @transform_0, window_bounds = array<i64: 1, 16, 512>}, {transform_indices = @transform_1, window_bounds = array<i64: 256, 512>}, {pipeline_mode = #tpu.pipeline_mode<synchronous>, transform_indices = @transform_2, window_bounds = array<i64: 2, 16, 256>}, {pipeline_mode = #tpu.pipeline_mode<synchronous>, transform_indices = @transform_3, window_bounds = array<i64: 16, 16>}, {pipeline_mode = #tpu.pipeline_mode<synchronous>, transform_indices = @transform_4, window_bounds = array<i64: 16, 1>}, {transform_indices = @transform_5, window_bounds = array<i64: 1, 16, 512>}]} {
    %c0 = arith.constant 0 : index
    %c0_0 = arith.constant 0 : index
    %c0_1 = arith.constant 0 : index
    %0 = vector.load %arg2[%c0, %c0_0, %c0_1] : memref<1x16x512xf32, #tpu.memory_space<vmem>>, vector<1x16x512xf32>
    %1 = vector.shape_cast %0 : vector<1x16x512xf32> to vector<16x512xf32>
    %2 = arith.truncf %1 : vector<16x512xf32> to vector<16x512xbf16>
    %3 = arith.index_cast %arg0 : i32 to index
    %c0_2 = arith.constant 0 : index
    %c0_3 = arith.constant 0 : index
    %4 = vector.load %arg4[%3, %c0_2, %c0_3] : memref<2x16x256xbf16, #tpu.memory_space<vmem>>, vector<1x16x256xbf16>
    %5 = vector.shape_cast %4 : vector<1x16x256xbf16> to vector<16x256xbf16>
    %c0_4 = arith.constant 0 : index
    %c0_5 = arith.constant 0 : index
    %6 = vector.load %arg5[%c0_4, %c0_5] : memref<16x16xbf16, #tpu.memory_space<vmem>>, vector<16x16xbf16>
    %cst = arith.constant dense<0.000000e+00> : vector<16x512xf32>
    %7 = tpu.matmul %6, %2, %cst {dimension_numbers = #tpu.dot_dimension_numbers<[1], [0], [0], [1], [0, 0, 1, 1], [], []>} : vector<16x16xbf16>, vector<16x512xbf16>, vector<16x512xf32> -> vector<16x512xf32>
    %c0_6 = arith.constant 0 : index
    %c0_7 = arith.constant 0 : index
    %8 = vector.load %arg3[%c0_6, %c0_7] : memref<256x512xbf16, #tpu.memory_space<vmem>>, vector<256x512xbf16>
    %cst_8 = arith.constant dense<0.000000e+00> : vector<16x512xf32>
    %9 = tpu.matmul %5, %8, %cst_8 {dimension_numbers = #tpu.dot_dimension_numbers<[1], [0], [0], [1], [0, 0, 1, 1], [], []>} : vector<16x256xbf16>, vector<256x512xbf16>, vector<16x512xf32> -> vector<16x512xf32>
    %10 = arith.addf %7, %9 : vector<16x512xf32>
    %c0_9 = arith.constant 0 : index
    %c0_10 = arith.constant 0 : index
    %11 = vector.load %arg6[%c0_9, %c0_10] : memref<16x1xf32, #tpu.memory_space<vmem>>, vector<16x1xf32>
    %12 = vector.broadcast %11 : vector<16x1xf32> to vector<16x512xf32>
    %13 = arith.addf %10, %12 : vector<16x512xf32>
    %14 = arith.truncf %13 : vector<16x512xf32> to vector<16x512xbf16>
    %c0_11 = arith.constant 0 : index
    %c0_12 = arith.constant 0 : index
    %c0_13 = arith.constant 0 : index
    %15 = vector.load %arg7[%c0_11, %c0_12, %c0_13] : memref<1x16x512xbf16, #tpu.memory_space<vmem>>, vector<1x16x512xbf16>
    %16 = vector.shape_cast %15 : vector<1x16x512xbf16> to vector<16x512xbf16>
    %17 = vector.shape_cast %14 : vector<16x512xbf16> to vector<1x16x512xbf16>
    tpu.vector_store %arg7[%c0_11, %c0_12, %c0_13], %17 {strides = array<i32>} : memref<1x16x512xbf16, #tpu.memory_space<vmem>>, vector<1x16x512xbf16>,
    return
  }
  func.func @transform_0(%arg0: i32, %arg1: i32) -> (i32, i32, i32) {
    %c0_i32 = arith.constant 0 : i32
    %c0_i32_0 = arith.constant 0 : i32
    return %arg0, %c0_i32, %arg1 : i32, i32, i32
  }
  func.func @transform_1(%arg0: i32, %arg1: i32) -> (i32, i32) {
    %c0_i32 = arith.constant 0 : i32
    %c0_i32_0 = arith.constant 0 : i32
    return %c0_i32, %arg1 : i32, i32
  }
  func.func @transform_2(%arg0: i32, %arg1: i32) -> (i32, i32, i32) {
    %c0_i32 = arith.constant 0 : i32
    %c0_i32_0 = arith.constant 0 : i32
    %c0_i32_1 = arith.constant 0 : i32
    %c0_i32_2 = arith.constant 0 : i32
    return %c0_i32, %c0_i32_0, %c0_i32_1 : i32, i32, i32
  }
  func.func @transform_3(%arg0: i32, %arg1: i32) -> (i32, i32) {
    %c0_i32 = arith.constant 0 : i32
    %c0_i32_0 = arith.constant 0 : i32
    %c0_i32_1 = arith.constant 0 : i32
    return %c0_i32, %c0_i32_0 : i32, i32
  }
  func.func @transform_4(%arg0: i32, %arg1: i32) -> (i32, i32) {
    %c0_i32 = arith.constant 0 : i32
    %c0_i32_0 = arith.constant 0 : i32
    %c0_i32_1 = arith.constant 0 : i32
    return %c0_i32, %c0_i32_0 : i32, i32
  }
  func.func @transform_5(%arg0: i32, %arg1: i32) -> (i32, i32, i32) {
    %c0_i32 = arith.constant 0 : i32
    %c0_i32_0 = arith.constant 0 : i32
    return %arg0, %c0_i32, %arg1 : i32, i32, i32
  }
}

</mosaic_0001>

<llo_original>
// kernel: tpu_custom_call.1
$region0: #{tpu_custom_call.1}
  #allocation0 [shape = 'u32[]', space=smem, size = 0x4, offset = 0x4, fixed_abs, tag = 'smem constant byte address 0x4 - core index']
  #allocation1 [shape = 'u32[72,128]{1,0:T(1,128)}', space=vmem, size = 0x9000, scoped, tag = 'internal scratch']
  %s0 = inlined_call_operand.hbm [shape: f32[2,16,512], index: 0, kind: input, shape index: {}]
  %s1 = inlined_call_operand.hbm [shape: bf16[256,512], index: 1, kind: input, shape index: {}]
  %s2 = inlined_call_operand.hbm [shape: bf16[2,16,256], index: 2, kind: input, shape index: {}]
  %s3 = inlined_call_operand.vmem [shape: bf16[16,16], index: 3, kind: input, shape index: {}]
  %s4 = inlined_call_operand.vmem [shape: f32[16,1], index: 4, kind: input, shape index: {}]
  %s5 = inlined_call_operand.hbm [shape: bf16[2,16,512], index: 5, kind: output, shape index: {}]
  %s6 = sld [smem:[#allocation0]]
  $region65: #{tpu_custom_call.1} parent=0
    _
  %s8 = ssub.s32 1, %s6
  %s9 = scalar_select 0, %s8, %s6
  $region1: #{tpu_custom_call.1} parent=0
    #allocation2 [shape = 'u8[65536]{0}', space=vmem, size = 0x10000, scoped, tag = 'input window, operand 0']
    #allocation3 [shape = 's32[2]{0}', space=sflag, size = 0x8, scoped, tag = 'scoped memory for tpu_custom_call.1']
    #allocation4 [shape = 's32[2]{0}', space=sflag, size = 0x8, scoped, tag = 'scoped memory for tpu_custom_call.1']
    #allocation5 [shape = 'u8[262144]{0}', space=vmem, size = 0x40000, scoped, tag = 'input window, operand 1, single buffered']
    #allocation6 [shape = 's32[1]{0}', space=sflag, size = 0x4, scoped, tag = 'scoped memory for tpu_custom_call.1']
    #allocation7 [shape = 'u8[16384]{0}', space=vmem, size = 0x4000, scoped, tag = 'input window, operand 2, single buffered']
    #allocation8 [shape = 'u8[32768]{0}', space=vmem, size = 0x8000, scoped, tag = 'output window, operand 0']
    %10 = vsyncpa [#allocation3], 0
    %s11 = scalar_lea.sflag [#allocation3], 1
    %12 = vsyncpa %s11, 0
    %13 = vsyncpa [#allocation6], 0
    %14 = vsyncpa [#allocation4], 0
    %s15 = scalar_lea.sflag [#allocation4], 1
    %16 = vsyncpa %s15, 0
    loop: start=0, step=1, limit=4
    $region2: #{tpu_custom_call.1} parent=1 // loop_pre_header
      _
    $region3: #{tpu_custom_call.1} parent=1 // loop_header
      %s18 = sphi 0, %s22
      %p19 = scmp.ge.s32.totalorder %s18, 4
      %s25 = sphi 0, %s37
      %s26 = sphi 0, %s33
      %s27 = sphi 0, %s25
      %s28 = sphi 0, %s26
      %s29 = sphi 0, %s27
      %s30 = sphi 0, %s28
      %s42 = sphi 0, %s44
      %s45 = sphi 0, %s42
      %s46 = sphi 0, %s45
      %s62 = sphi 0, %s46
      %s68 = sphi 0, %s70
      %s71 = sphi 0, %s68
      %s72 = sphi 0, %s71
      %s88 = sphi 0, %s72
      %s92 = sphi 0, %s92
      %s94 = sphi 0, %s92
      %s95 = sphi 0, %s94
      %s109 = sphi 0, %s95
      %s113 = sphi 0, %s113
      %s115 = sphi 0, %s113
      %s116 = sphi 0, %s115
      %s130 = sphi 0, %s116
      %s134 = sphi 0, %s134
      %s136 = sphi 0, %s134
      %s137 = sphi 0, %s136
      %s151 = sphi 0, %s137
      %s159 = sphi 0, %s161
      %s162 = sphi 0, %s159
      %s163 = sphi 0, %s162
      %s179 = sphi 0, %s163
    $region4: #{tpu_custom_call.1} parent=1 // loop_header_branch
      %21 = sbr.rel (%p19) target = $region8
    $region5: #{tpu_custom_call.1} parent=1 // loop_body
      %s23 = ssub.s32 %s18, 1
      %s24 = ssub.s32 %s18, 2
      %s31 = sadd.s32 1, %s26
      %p32 = scmp.ge.s32.totalorder %s31, 1
      %s33 = scalar_select %p32, 0, %s31
      %s34 = sadd.s32 1, %s25
      %s35 = scalar_select %p32, %s34, %s25
      %p36 = scmp.ge.s32.totalorder %s35, 2
      %s37 = scalar_select %p36, 0, %s35
      %s38 = ssub.s32 %s25, %s37
      %s39 = ssub.s32 %s26, %s33
      %s40 = sor.u32 %s38, %s39
      %p41 = scmp.eq.s32.totalorder %s40, 0
      %s43 = sadd.s32 %s42, 1
      %s44 = scalar_select %p41, %s42, %s43
      %p47 = pneg %p41
      %p48 = scmp.eq.s32.totalorder %s18, 1
      %p49 = por %p47, %p48
      %p50 = scmp.ne.s32.totalorder %s42, %s45
      %p51 = scmp.eq.s32.totalorder %s18, 0
      %p52 = por %p50, %p51
      %p53 = scmp.ne.s32.totalorder %s42, %s45
      %p54 = scmp.eq.s32.totalorder %s23, 1
      %p55 = por %p53, %p54
      %p56 = scmp.ne.s32.totalorder %s45, %s46
      %p57 = scmp.eq.s32.totalorder %s23, 0
      %p58 = por %p56, %p57
      %p59 = scmp.ne.s32.totalorder %s45, %s46
      %p60 = scmp.eq.s32.totalorder %s24, 1
      %p61 = por %p59, %p60
      %p63 = scmp.ne.s32.totalorder %s46, %s62
      %p64 = scmp.eq.s32.totalorder %s24, 0
      %p65 = por %p63, %p64
      %s66 = ssub.s32 %s26, %s33
      %p67 = scmp.eq.s32.totalorder %s66, 0
      %s69 = sadd.s32 %s68, 1
      %s70 = scalar_select %p67, %s68, %s69
      %p73 = pneg %p67
      %p74 = scmp.eq.s32.totalorder %s18, 1
      %p75 = por %p73, %p74
      %p76 = scmp.ne.s32.totalorder %s68, %s71
      %p77 = scmp.eq.s32.totalorder %s18, 0
      %p78 = por %p76, %p77
      %p79 = scmp.ne.s32.totalorder %s68, %s71
      %p80 = scmp.eq.s32.totalorder %s23, 1
      %p81 = por %p79, %p80
      %p82 = scmp.ne.s32.totalorder %s71, %s72
      %p83 = scmp.eq.s32.totalorder %s23, 0
      %p84 = por %p82, %p83
      %p85 = scmp.ne.s32.totalorder %s71, %s72
      %p86 = scmp.eq.s32.totalorder %s24, 1
      %p87 = por %p85, %p86
      %p89 = scmp.ne.s32.totalorder %s72, %s88
      %p90 = scmp.eq.s32.totalorder %s24, 0
      %p91 = por %p89, %p90
      %s93 = sadd.s32 %s92, 1
      %p96 = scmp.eq.s32.totalorder %s18, 1
      %p97 = scmp.ne.s32.totalorder %s92, %s94
      %p98 = scmp.eq.s32.totalorder %s18, 0
      %p99 = por %p97, %p98
      %p100 = scmp.ne.s32.totalorder %s92, %s94
      %p101 = scmp.eq.s32.totalorder %s23, 1
      %p102 = por %p100, %p101
      %p103 = scmp.ne.s32.totalorder %s94, %s95
      %p104 = scmp.eq.s32.totalorder %s23, 0
      %p105 = por %p103, %p104
      %p106 = scmp.ne.s32.totalorder %s94, %s95
      %p107 = scmp.eq.s32.totalorder %s24, 1
      %p108 = por %p106, %p107
      %p110 = scmp.ne.s32.totalorder %s95, %s109
      %p111 = scmp.eq.s32.totalorder %s24, 0
      %p112 = por %p110, %p111
      %s114 = sadd.s32 %s113, 1
      %p117 = scmp.eq.s32.totalorder %s18, 1
      %p118 = scmp.ne.s32.totalorder %s113, %s115
      %p119 = scmp.eq.s32.totalorder %s18, 0
      %p120 = por %p118, %p119
      %p121 = scmp.ne.s32.totalorder %s113, %s115
      %p122 = scmp.eq.s32.totalorder %s23, 1
      %p123 = por %p121, %p122
      %p124 = scmp.ne.s32.totalorder %s115, %s116
      %p125 = scmp.eq.s32.totalorder %s23, 0
      %p126 = por %p124, %p125
      %p127 = scmp.ne.s32.totalorder %s115, %s116
      %p128 = scmp.eq.s32.totalorder %s24, 1
      %p129 = por %p127, %p128
      %p131 = scmp.ne.s32.totalorder %s116, %s130
      %p132 = scmp.eq.s32.totalorder %s24, 0
      %p133 = por %p131, %p132
      %s135 = sadd.s32 %s134, 1
      %p138 = scmp.eq.s32.totalorder %s18, 1
      %p139 = scmp.ne.s32.totalorder %s134, %s136
      %p140 = scmp.eq.s32.totalorder %s18, 0
      %p141 = por %p139, %p140
      %p142 = scmp.ne.s32.totalorder %s134, %s136
      %p143 = scmp.eq.s32.totalorder %s23, 1
      %p144 = por %p142, %p143
      %p145 = scmp.ne.s32.totalorder %s136, %s137
      %p146 = scmp.eq.s32.totalorder %s23, 0
      %p147 = por %p145, %p146
      %p148 = scmp.ne.s32.totalorder %s136, %s137
      %p149 = scmp.eq.s32.totalorder %s24, 1
      %p150 = por %p148, %p149
      %p152 = scmp.ne.s32.totalorder %s137, %s151
      %p153 = scmp.eq.s32.totalorder %s24, 0
      %p154 = por %p152, %p153
      %s155 = ssub.s32 %s25, %s37
      %s156 = ssub.s32 %s26, %s33
      %s157 = sor.u32 %s155, %s156
      %p158 = scmp.eq.s32.totalorder %s157, 0
      %s160 = sadd.s32 %s159, 1
      %s161 = scalar_select %p158, %s159, %s160
      %p164 = pneg %p158
      %p165 = scmp.eq.s32.totalorder %s18, 1
      %p166 = por %p164, %p165
      %p167 = scmp.ne.s32.totalorder %s159, %s162
      %p168 = scmp.eq.s32.totalorder %s18, 0
      %p169 = por %p167, %p168
      %p170 = scmp.ne.s32.totalorder %s159, %s162
      %p171 = scmp.eq.s32.totalorder %s23, 1
      %p172 = por %p170, %p171
      %p173 = scmp.ne.s32.totalorder %s162, %s163
      %p174 = scmp.eq.s32.totalorder %s23, 0
      %p175 = por %p173, %p174
      %p176 = scmp.ne.s32.totalorder %s162, %s163
      %p177 = scmp.eq.s32.totalorder %s24, 1
      %p178 = por %p176, %p177
      %p180 = scmp.ne.s32.totalorder %s163, %s179
      %p181 = scmp.eq.s32.totalorder %s24, 0
      %p182 = por %p180, %p181
      %p183 = scmp.le.s32.totalorder 1, %s18
      %p184 = scmp.lt.s32.totalorder %s18, 3
      %p185 = pnand %p183, %p184
      %p186 = pneg %p185
      // Predicated region
      $region9: #{tpu_custom_call.1} parent=5 // pred_check
        _
      $region10: #{tpu_custom_call.1} parent=5 // pred_check_branch
        %188 = sbr.rel (%p185) target = $region12
      $region11: #{tpu_custom_call.1} parent=5 // pred_region
        %s189 = ssub.s32 %s18, 1
        // Predicated region
        $region13: #{tpu_custom_call.1} parent=11 // pred_check
          %p190 = pneg %p84
        $region14: #{tpu_custom_call.1} parent=11 // pred_check_branch
          %192 = sbr.rel (%p190) target = $region16
        $region15: #{tpu_custom_call.1} parent=11 // pred_region
          %s193 = smul.u32 4, %s28
          %195 = vsyncadd [#allocation6], 0
          %s196 = smul.addr %s193, 4
          %s197 = scalar_lea.hbm %s1, %s196
          %s198 = sshll.u32 %s197, 4
          %s199 = int_to_ptr.hbm [resolvable:$true] %s198
          %s200 = sshll.u32 [#allocation5], 4
          %s201 = int_to_ptr.vmem [resolvable:$true] %s200
          %206 = dma.hbm_to_vmem [thread:$0]  %s199, 8192, %s201, [#allocation6], 256, 256, 16
        $region16: #{tpu_custom_call.1} parent=11 // pred_fallthru
          _
        // Predicated region
        $region17: #{tpu_custom_call.1} parent=11 // pred_check
          %p207 = pneg %p105
        $region18: #{tpu_custom_call.1} parent=11 // pred_check_branch
          %209 = sbr.rel (%p207) target = $region20
        $region19: #{tpu_custom_call.1} parent=11 // pred_region
          %211 = vsyncadd [#allocation6], 0
          %s212 = sshll.u32 %s2, 4
          %s213 = int_to_ptr.hbm [resolvable:$true] %s212
          %s214 = sshll.u32 [#allocation7], 4
          %s215 = int_to_ptr.vmem [resolvable:$true] %s214
          %220 = dma.hbm_to_vmem [thread:$0]  %s213, 512, %s215, [#allocation6], 128, 128, 8
        $region20: #{tpu_custom_call.1} parent=11 // pred_fallthru
          _
        // Predicated region
        $region21: #{tpu_custom_call.1} parent=11 // pred_check
          %p221 = pneg %p126
        $region22: #{tpu_custom_call.1} parent=11 // pred_check_branch
          %223 = sbr.rel (%p221) target = $region24
        $region23: #{tpu_custom_call.1} parent=11 // pred_region
          _
        $region24: #{tpu_custom_call.1} parent=11 // pred_fallthru
          _
        // Predicated region
        $region25: #{tpu_custom_call.1} parent=11 // pred_check
          %p224 = pneg %p147
        $region26: #{tpu_custom_call.1} parent=11 // pred_check_branch
          %226 = sbr.rel (%p224) target = $region28
        $region27: #{tpu_custom_call.1} parent=11 // pred_region
          _
        $region28: #{tpu_custom_call.1} parent=11 // pred_fallthru
          _
      $region12: #{tpu_custom_call.1} parent=5 // pred_fallthru
        _
      %p227 = scmp.lt.s32.totalorder %s18, 2
      // Predicated region
      $region29: #{tpu_custom_call.1} parent=5 // pred_check
        %p228 = pneg %p227
      $region30: #{tpu_custom_call.1} parent=5 // pred_check_branch
        %230 = sbr.rel (%p228) target = $region32
      $region31: #{tpu_custom_call.1} parent=5 // pred_region
        // Predicated region
        $region33: #{tpu_custom_call.1} parent=31 // pred_check
          %p231 = pneg %p52
        $region34: #{tpu_custom_call.1} parent=31 // pred_check_branch
          %233 = sbr.rel (%p231) target = $region36
        $region35: #{tpu_custom_call.1} parent=31 // pred_region
          %s234 = sand.u32 %s42, 1
          %s235 = scalar_lea.sflag [#allocation3], %s234
          %s236 = sand.u32 %s42, 1
          %s237 = smul.addr %s236, 64
          %s238 = scalar_lea.vmem [#allocation2], %s237
          %s239 = smul.u32 4, %s26
          %241 = vsyncadd %s235, 0
          %s242 = smul.addr %s25, 8
          %s243 = sadd.s32 %s239, %s242
          %s244 = smul.addr %s243, 8
          %s245 = scalar_lea.hbm %s0, %s244
          %s246 = sshll.u32 %s245, 4
          %s247 = int_to_ptr.hbm [resolvable:$true] %s246
          %s248 = sshll.u32 %s238, 4
          %s249 = int_to_ptr.vmem [resolvable:$true] %s248
          %254 = dma.hbm_to_vmem [thread:$0]  %s247, 1024, %s249, %s235, 512, 512, 32
        $region36: #{tpu_custom_call.1} parent=31 // pred_fallthru
          _
      $region32: #{tpu_custom_call.1} parent=5 // pred_fallthru
        _
      %p255 = scmp.le.s32.totalorder 1, %s18
      %p256 = scmp.lt.s32.totalorder %s18, 3
      %p257 = pnand %p255, %p256
      %p258 = pneg %p257
      // Predicated region
      $region37: #{tpu_custom_call.1} parent=5 // pred_check
        _
      $region38: #{tpu_custom_call.1} parent=5 // pred_check_branch
        %260 = sbr.rel (%p257) target = $region40
      $region39: #{tpu_custom_call.1} parent=5 // pred_region
        %s261 = ssub.s32 %s18, 1
        %s262 = sand.u32 %s45, 1
        %s263 = scalar_lea.sflag [#allocation3], %s262
        %s264 = sand.u32 %s45, 1
        %s265 = smul.addr %s264, 64
        %s266 = scalar_lea.vmem [#allocation2], %s265
        // Predicated region
        $region41: #{tpu_custom_call.1} parent=39 // pred_check
          %p267 = pneg %p58
        $region42: #{tpu_custom_call.1} parent=39 // pred_check_branch
          %269 = sbr.rel (%p267) target = $region44
        $region43: #{tpu_custom_call.1} parent=39 // pred_region
          %271 = dma.done %s263, 1024
        $region44: #{tpu_custom_call.1} parent=39 // pred_fallthru
          _
        // Predicated region
        $region45: #{tpu_custom_call.1} parent=39 // pred_check
          %p272 = pneg %p84
        $region46: #{tpu_custom_call.1} parent=39 // pred_check_branch
          %274 = sbr.rel (%p272) target = $region48
        $region47: #{tpu_custom_call.1} parent=39 // pred_region
          %276 = dma.done [#allocation6], 8192
        $region48: #{tpu_custom_call.1} parent=39 // pred_fallthru
          _
        // Predicated region
        $region49: #{tpu_custom_call.1} parent=39 // pred_check
          %p277 = pneg %p105
        $region50: #{tpu_custom_call.1} parent=39 // pred_check_branch
          %279 = sbr.rel (%p277) target = $region52
        $region51: #{tpu_custom_call.1} parent=39 // pred_region
          %281 = dma.done [#allocation6], 512
        $region52: #{tpu_custom_call.1} parent=39 // pred_fallthru
          _
        %s282 = sand.u32 %s45, 1
        %s283 = scalar_lea.sflag [#allocation3], %s282
        %s284 = sand.u32 %s45, 1
        %s285 = smul.addr %s284, 64
        %s286 = scalar_lea.vmem [#allocation2], %s285
        %p287 = pneg %p58
        %p288 = pneg %p55
        %p289 = pneg %p84
        %p290 = pneg %p81
        %p291 = pneg %p105
        %p292 = pneg %p102
        %p293 = pneg %p126
        %p294 = pneg %p123
        %p295 = pneg %p147
        %p296 = pneg %p144
        %p297 = pneg %p175
        %p298 = pneg %p172
        %s299 = sand.u32 %s162, 1
        %s300 = scalar_lea.sflag [#allocation4], %s299
        %s301 = sand.u32 %s162, 1
        %s302 = smul.addr %s301, 32
        %s303 = scalar_lea.vmem [#allocation8], %s302
        %s304 = smul.u32 4, %s28
        %s305 = smul.u32 4, %s28
        %s306 = smul.u32 4, %s28
        %v308 = vld [vmem:[%s266] sm:$0xff]
        %v309 = vld [vmem:[%s266 + $0x8] sm:$0xff]
        %v310 = vld [vmem:[%s266 + $0x10] sm:$0xff]
        %v311 = vld [vmem:[%s266 + $0x18] sm:$0xff]
        %v312 = vld [vmem:[%s266 + $0x20] sm:$0xff]
        %v313 = vld [vmem:[%s266 + $0x28] sm:$0xff]
        %v314 = vld [vmem:[%s266 + $0x30] sm:$0xff]
        %v315 = vld [vmem:[%s266 + $0x38] sm:$0xff]
        %v316 = vpack.c.bf16 %v312, %v308
        %v317 = vpack.c.bf16 %v313, %v309
        %v318 = vpack.c.bf16 %v314, %v310
        %v319 = vpack.c.bf16 %v315, %v311
        %s320 = smul.u32 %s27, 4
        %s321 = smul.addr %s320, 4
        %s322 = scalar_lea.vmem [#allocation7], %s321
        %v323 = vld [vmem:[%s322] sm:$0xff]
        %v324 = vld [vmem:[%s322 + $0x8] sm:$0xff]
        %v325 = vld [vmem:[%s3] sm:$0xf]
        %v326 = vld [vmem:[%s3 + $0x4] sm:$0xf]
        %v327 = vld [vmem:[#allocation5] sm:$0xff]
        %v328 = vld [vmem:[#allocation5 + $0x8] sm:$0xff]
        %v329 = vld [vmem:[#allocation5 + $0x10] sm:$0xff]
        %v330 = vld [vmem:[#allocation5 + $0x18] sm:$0xff]
        %v331 = vld [vmem:[#allocation5 + $0x20] sm:$0xff]
        %v332 = vld [vmem:[#allocation5 + $0x28] sm:$0xff]
        %v333 = vld [vmem:[#allocation5 + $0x30] sm:$0xff]
        %v334 = vld [vmem:[#allocation5 + $0x38] sm:$0xff]
        %v335 = vld [vmem:[#allocation5 + $0x40] sm:$0xff]
        %v336 = vld [vmem:[#allocation5 + $0x48] sm:$0xff]
        %v337 = vld [vmem:[#allocation5 + $0x50] sm:$0xff]
        %v338 = vld [vmem:[#allocation5 + $0x58] sm:$0xff]
        %v339 = vld [vmem:[#allocation5 + $0x60] sm:$0xff]
        %v340 = vld [vmem:[#allocation5 + $0x68] sm:$0xff]
        %v341 = vld [vmem:[#allocation5 + $0x70] sm:$0xff]
        %v342 = vld [vmem:[#allocation5 + $0x78] sm:$0xff]
        %v343 = vld [vmem:[#allocation5 + $0x80] sm:$0xff]
        %v344 = vld [vmem:[#allocation5 + $0x88] sm:$0xff]
        %v345 = vld [vmem:[#allocation5 + $0x90] sm:$0xff]
        %v346 = vld [vmem:[#allocation5 + $0x98] sm:$0xff]
        %v347 = vld [vmem:[#allocation5 + $0xa0] sm:$0xff]
        %v348 = vld [vmem:[#allocation5 + $0xa8] sm:$0xff]
        %v349 = vld [vmem:[#allocation5 + $0xb0] sm:$0xff]
        %v350 = vld [vmem:[#allocation5 + $0xb8] sm:$0xff]
        %v351 = vld [vmem:[#allocation5 + $0xc0] sm:$0xff]
        %v352 = vld [vmem:[#allocation5 + $0xc8] sm:$0xff]
        %v353 = vld [vmem:[#allocation5 + $0xd0] sm:$0xff]
        %v354 = vld [vmem:[#allocation5 + $0xd8] sm:$0xff]
        %v355 = vld [vmem:[#allocation5 + $0xe0] sm:$0xff]
        %v356 = vld [vmem:[#allocation5 + $0xe8] sm:$0xff]
        %v357 = vld [vmem:[#allocation5 + $0xf0] sm:$0xff]
        %v358 = vld [vmem:[#allocation5 + $0xf8] sm:$0xff]
        %v359 = vld [vmem:[#allocation5 + $0x100] sm:$0xff]
        %v360 = vld [vmem:[#allocation5 + $0x108] sm:$0xff]
        %v361 = vld [vmem:[#allocation5 + $0x110] sm:$0xff]
        %v362 = vld [vmem:[#allocation5 + $0x118] sm:$0xff]
        %v363 = vld [vmem:[#allocation5 + $0x120] sm:$0xff]
        %v364 = vld [vmem:[#allocation5 + $0x128] sm:$0xff]
        %v365 = vld [vmem:[#allocation5 + $0x130] sm:$0xff]
        %v366 = vld [vmem:[#allocation5 + $0x138] sm:$0xff]
        %v367 = vld [vmem:[#allocation5 + $0x140] sm:$0xff]
        %v368 = vld [vmem:[#allocation5 + $0x148] sm:$0xff]
        %v369 = vld [vmem:[#allocation5 + $0x150] sm:$0xff]
        %v370 = vld [vmem:[#allocation5 + $0x158] sm:$0xff]
        %v371 = vld [vmem:[#allocation5 + $0x160] sm:$0xff]
        %v372 = vld [vmem:[#allocation5 + $0x168] sm:$0xff]
        %v373 = vld [vmem:[#allocation5 + $0x170] sm:$0xff]
        %v374 = vld [vmem:[#allocation5 + $0x178] sm:$0xff]
        %v375 = vld [vmem:[#allocation5 + $0x180] sm:$0xff]
        %v376 = vld [vmem:[#allocation5 + $0x188] sm:$0xff]
        %v377 = vld [vmem:[#allocation5 + $0x190] sm:$0xff]
        %v378 = vld [vmem:[#allocation5 + $0x198] sm:$0xff]
        %v379 = vld [vmem:[#allocation5 + $0x1a0] sm:$0xff]
        %v380 = vld [vmem:[#allocation5 + $0x1a8] sm:$0xff]
        %v381 = vld [vmem:[#allocation5 + $0x1b0] sm:$0xff]
        %v382 = vld [vmem:[#allocation5 + $0x1b8] sm:$0xff]
        %v383 = vld [vmem:[#allocation5 + $0x1c0] sm:$0xff]
        %v384 = vld [vmem:[#allocation5 + $0x1c8] sm:$0xff]
        %v385 = vld [vmem:[#allocation5 + $0x1d0] sm:$0xff]
        %v386 = vld [vmem:[#allocation5 + $0x1d8] sm:$0xff]
        %v387 = vld [vmem:[#allocation5 + $0x1e0] sm:$0xff]
        %v388 = vld [vmem:[#allocation5 + $0x1e8] sm:$0xff]
        %v389 = vld [vmem:[#allocation5 + $0x1f0] sm:$0xff]
        %v390 = vld [vmem:[#allocation5 + $0x1f8] sm:$0xff]
        %v393 = vunpack.c.l.b16 %v323
        %v394 = vunpack.c.h.b16 %v323
        %v395 = vunpack.c.l.b16 %v324
        %v396 = vunpack.c.h.b16 %v324
        %v397 = vpack.c.b16 %v395, %v393
        %v398 = vpack.c.b16 %v396, %v394
        %v465 = vunpack.c.l.b16 %v327
        %v466 = vunpack.c.h.b16 %v327
        %v467 = vunpack.c.l.b16 %v328
        %v468 = vunpack.c.h.b16 %v328
        %v469 = vunpack.c.l.b16 %v329
        %v470 = vunpack.c.h.b16 %v329
        %v471 = vunpack.c.l.b16 %v330
        %v472 = vunpack.c.h.b16 %v330
        %v473 = vunpack.c.l.b16 %v331
        %v474 = vunpack.c.h.b16 %v331
        %v475 = vunpack.c.l.b16 %v332
        %v476 = vunpack.c.h.b16 %v332
        %v477 = vunpack.c.l.b16 %v333
        %v478 = vunpack.c.h.b16 %v333
        %v479 = vunpack.c.l.b16 %v334
        %v480 = vunpack.c.h.b16 %v334
        %v481 = vunpack.c.l.b16 %v335
        %v482 = vunpack.c.h.b16 %v335
        %v483 = vunpack.c.l.b16 %v336
        %v484 = vunpack.c.h.b16 %v336
        %v485 = vunpack.c.l.b16 %v337
        %v486 = vunpack.c.h.b16 %v337
        %v487 = vunpack.c.l.b16 %v338
        %v488 = vunpack.c.h.b16 %v338
        %v489 = vunpack.c.l.b16 %v339
        %v490 = vunpack.c.h.b16 %v339
        %v491 = vunpack.c.l.b16 %v340
        %v492 = vunpack.c.h.b16 %v340
        %v493 = vunpack.c.l.b16 %v341
        %v494 = vunpack.c.h.b16 %v341
        %v495 = vunpack.c.l.b16 %v342
        %v496 = vunpack.c.h.b16 %v342
        %v497 = vunpack.c.l.b16 %v343
        %v498 = vunpack.c.h.b16 %v343
        %v499 = vunpack.c.l.b16 %v344
        %v500 = vunpack.c.h.b16 %v344
        %v501 = vunpack.c.l.b16 %v345
        %v502 = vunpack.c.h.b16 %v345
        %v503 = vunpack.c.l.b16 %v346
        %v504 = vunpack.c.h.b16 %v346
        %v505 = vunpack.c.l.b16 %v347
        %v506 = vunpack.c.h.b16 %v347
        %v507 = vunpack.c.l.b16 %v348
        %v508 = vunpack.c.h.b16 %v348
        %v509 = vunpack.c.l.b16 %v349
        %v510 = vunpack.c.h.b16 %v349
        %v511 = vunpack.c.l.b16 %v350
        %v512 = vunpack.c.h.b16 %v350
        %v513 = vunpack.c.l.b16 %v351
        %v514 = vunpack.c.h.b16 %v351
        %v515 = vunpack.c.l.b16 %v352
        %v516 = vunpack.c.h.b16 %v352
        %v517 = vunpack.c.l.b16 %v353
        %v518 = vunpack.c.h.b16 %v353
        %v519 = vunpack.c.l.b16 %v354
        %v520 = vunpack.c.h.b16 %v354
        %v521 = vunpack.c.l.b16 %v355
        %v522 = vunpack.c.h.b16 %v355
        %v523 = vunpack.c.l.b16 %v356
        %v524 = vunpack.c.h.b16 %v356
        %v525 = vunpack.c.l.b16 %v357
        %v526 = vunpack.c.h.b16 %v357
        %v527 = vunpack.c.l.b16 %v358
        %v528 = vunpack.c.h.b16 %v358
        %v529 = vunpack.c.l.b16 %v359
        %v530 = vunpack.c.h.b16 %v359
        %v531 = vunpack.c.l.b16 %v360
        %v532 = vunpack.c.h.b16 %v360
        %v533 = vunpack.c.l.b16 %v361
        %v534 = vunpack.c.h.b16 %v361
        %v535 = vunpack.c.l.b16 %v362
        %v536 = vunpack.c.h.b16 %v362
        %v537 = vunpack.c.l.b16 %v363
        %v538 = vunpack.c.h.b16 %v363
        %v539 = vunpack.c.l.b16 %v364
        %v540 = vunpack.c.h.b16 %v364
        %v541 = vunpack.c.l.b16 %v365
        %v542 = vunpack.c.h.b16 %v365
        %v543 = vunpack.c.l.b16 %v366
        %v544 = vunpack.c.h.b16 %v366
        %v545 = vunpack.c.l.b16 %v367
        %v546 = vunpack.c.h.b16 %v367
        %v547 = vunpack.c.l.b16 %v368
        %v548 = vunpack.c.h.b16 %v368
        %v549 = vunpack.c.l.b16 %v369
        %v550 = vunpack.c.h.b16 %v369
        %v551 = vunpack.c.l.b16 %v370
        %v552 = vunpack.c.h.b16 %v370
        %v553 = vunpack.c.l.b16 %v371
        %v554 = vunpack.c.h.b16 %v371
        %v555 = vunpack.c.l.b16 %v372
        %v556 = vunpack.c.h.b16 %v372
        %v557 = vunpack.c.l.b16 %v373
        %v558 = vunpack.c.h.b16 %v373
        %v559 = vunpack.c.l.b16 %v374
        %v560 = vunpack.c.h.b16 %v374
        %v561 = vunpack.c.l.b16 %v375
        %v562 = vunpack.c.h.b16 %v375
        %v563 = vunpack.c.l.b16 %v376
        %v564 = vunpack.c.h.b16 %v376
        %v565 = vunpack.c.l.b16 %v377
        %v566 = vunpack.c.h.b16 %v377
        %v567 = vunpack.c.l.b16 %v378
        %v568 = vunpack.c.h.b16 %v378
        %v569 = vunpack.c.l.b16 %v379
        %v570 = vunpack.c.h.b16 %v379
        %v571 = vunpack.c.l.b16 %v380
        %v572 = vunpack.c.h.b16 %v380
        %v573 = vunpack.c.l.b16 %v381
        %v574 = vunpack.c.h.b16 %v381
        %v575 = vunpack.c.l.b16 %v382
        %v576 = vunpack.c.h.b16 %v382
        %v577 = vunpack.c.l.b16 %v383
        %v578 = vunpack.c.h.b16 %v383
        %v579 = vunpack.c.l.b16 %v384
        %v580 = vunpack.c.h.b16 %v384
        %v581 = vunpack.c.l.b16 %v385
        %v582 = vunpack.c.h.b16 %v385
        %v583 = vunpack.c.l.b16 %v386
        %v584 = vunpack.c.h.b16 %v386
        %v585 = vunpack.c.l.b16 %v387
        %v586 = vunpack.c.h.b16 %v387
        %v587 = vunpack.c.l.b16 %v388
        %v588 = vunpack.c.h.b16 %v388
        %v589 = vunpack.c.l.b16 %v389
        %v590 = vunpack.c.h.b16 %v389
        %v591 = vunpack.c.l.b16 %v390
        %v592 = vunpack.c.h.b16 %v390
        %v593 = vpack.c.b16 %v469, %v465
        %v594 = vpack.c.b16 %v470, %v466
        %v595 = vpack.c.b16 %v471, %v467
        %v596 = vpack.c.b16 %v472, %v468
        %v597 = vpack.c.b16 %v477, %v473
        %v598 = vpack.c.b16 %v478, %v474
        %v599 = vpack.c.b16 %v479, %v475
        %v600 = vpack.c.b16 %v480, %v476
        %v601 = vpack.c.b16 %v485, %v481
        %v602 = vpack.c.b16 %v486, %v482
        %v603 = vpack.c.b16 %v487, %v483
        %v604 = vpack.c.b16 %v488, %v484
        %v605 = vpack.c.b16 %v493, %v489
        %v606 = vpack.c.b16 %v494, %v490
        %v607 = vpack.c.b16 %v495, %v491
        %v608 = vpack.c.b16 %v496, %v492
        %v609 = vpack.c.b16 %v501, %v497
        %v610 = vpack.c.b16 %v502, %v498
        %v611 = vpack.c.b16 %v503, %v499
        %v612 = vpack.c.b16 %v504, %v500
        %v613 = vpack.c.b16 %v509, %v505
        %v614 = vpack.c.b16 %v510, %v506
        %v615 = vpack.c.b16 %v511, %v507
        %v616 = vpack.c.b16 %v512, %v508
        %v617 = vpack.c.b16 %v517, %v513
        %v618 = vpack.c.b16 %v518, %v514
        %v619 = vpack.c.b16 %v519, %v515
        %v620 = vpack.c.b16 %v520, %v516
        %v621 = vpack.c.b16 %v525, %v521
        %v622 = vpack.c.b16 %v526, %v522
        %v623 = vpack.c.b16 %v527, %v523
        %v624 = vpack.c.b16 %v528, %v524
        %v625 = vpack.c.b16 %v533, %v529
        %v626 = vpack.c.b16 %v534, %v530
        %v627 = vpack.c.b16 %v535, %v531
        %v628 = vpack.c.b16 %v536, %v532
        %v629 = vpack.c.b16 %v541, %v537
        %v630 = vpack.c.b16 %v542, %v538
        %v631 = vpack.c.b16 %v543, %v539
        %v632 = vpack.c.b16 %v544, %v540
        %v633 = vpack.c.b16 %v549, %v545
        %v634 = vpack.c.b16 %v550, %v546
        %v635 = vpack.c.b16 %v551, %v547
        %v636 = vpack.c.b16 %v552, %v548
        %v637 = vpack.c.b16 %v557, %v553
        %v638 = vpack.c.b16 %v558, %v554
        %v639 = vpack.c.b16 %v559, %v555
        %v640 = vpack.c.b16 %v560, %v556
        %v641 = vpack.c.b16 %v565, %v561
        %v642 = vpack.c.b16 %v566, %v562
        %v643 = vpack.c.b16 %v567, %v563
        %v644 = vpack.c.b16 %v568, %v564
        %v645 = vpack.c.b16 %v573, %v569
        %v646 = vpack.c.b16 %v574, %v570
        %v647 = vpack.c.b16 %v575, %v571
        %v648 = vpack.c.b16 %v576, %v572
        %v649 = vpack.c.b16 %v581, %v577
        %v650 = vpack.c.b16 %v582, %v578
        %v651 = vpack.c.b16 %v583, %v579
        %v652 = vpack.c.b16 %v584, %v580
        %v653 = vpack.c.b16 %v589, %v585
        %v654 = vpack.c.b16 %v590, %v586
        %v655 = vpack.c.b16 %v591, %v587
        %v656 = vpack.c.b16 %v592, %v588
        %721 = vmatpush.bf16.msra.mxu0 %v621
        %722 = vmatpush.bf16.msra.mxu0 %v617
        %723 = vmatpush.bf16.msra.mxu0 %v613
        %724 = vmatpush.bf16.msra.mxu0 %v609
        %725 = vmatpush.bf16.msra.mxu0 %v605
        %726 = vmatpush.bf16.msra.mxu0 %v601
        %727 = vmatpush.bf16.msra.mxu0 %v597
        %728 = vmatpush.bf16.msra.mxu0 %v593
        %729 = vmatmul.bf16.gmra.mxu0 %v397
        %v730 = vpop.f32.mrf.mxu0
        %v731 = vadd.f32 0.0, %v730
        %v732 = vpop.f32.mrf.mxu0
        %v733 = vadd.f32 0.0, %v732
        %734 = vdwg.mxu0
        %735 = vmatpush.bf16.msra.mxu0 %v653
        %736 = vmatpush.bf16.msra.mxu0 %v649
        %737 = vmatpush.bf16.msra.mxu0 %v645
        %738 = vmatpush.bf16.msra.mxu0 %v641
        %739 = vmatpush.bf16.msra.mxu0 %v637
        %740 = vmatpush.bf16.msra.mxu0 %v633
        %741 = vmatpush.bf16.msra.mxu0 %v629
        %742 = vmatpush.bf16.msra.mxu0 %v625
        %743 = vmatmul.bf16.gmra.mxu0 %v398
        %v744 = vpop.f32.mrf.mxu0
        %v745 = vadd.f32 %v731, %v744
        %v746 = vpop.f32.mrf.mxu0
        %v747 = vadd.f32 %v733, %v746
        %748 = vdwg.mxu0
        %749 = vmatpush.bf16.msra.mxu0 %v622
        %750 = vmatpush.bf16.msra.mxu0 %v618
        %751 = vmatpush.bf16.msra.mxu0 %v614
        %752 = vmatpush.bf16.msra.mxu0 %v610
        %753 = vmatpush.bf16.msra.mxu0 %v606
        %754 = vmatpush.bf16.msra.mxu0 %v602
        %755 = vmatpush.bf16.msra.mxu0 %v598
        %756 = vmatpush.bf16.msra.mxu0 %v594
        %757 = vmatmul.bf16.gmra.mxu0 %v397
        %v758 = vpop.f32.mrf.mxu0
        %v759 = vadd.f32 0.0, %v758
        %v760 = vpop.f32.mrf.mxu0
        %v761 = vadd.f32 0.0, %v760
        %762 = vdwg.mxu0
        %763 = vmatpush.bf16.msra.mxu0 %v654
        %764 = vmatpush.bf16.msra.mxu0 %v650
        %765 = vmatpush.bf16.msra.mxu0 %v646
        %766 = vmatpush.bf16.msra.mxu0 %v642
        %767 = vmatpush.bf16.msra.mxu0 %v638
        %768 = vmatpush.bf16.msra.mxu0 %v634
        %769 = vmatpush.bf16.msra.mxu0 %v630
        %770 = vmatpush.bf16.msra.mxu0 %v626
        %771 = vmatmul.bf16.gmra.mxu0 %v398
        %v772 = vpop.f32.mrf.mxu0
        %v773 = vadd.f32 %v759, %v772
        %v774 = vpop.f32.mrf.mxu0
        %v775 = vadd.f32 %v761, %v774
        %776 = vdwg.mxu0
        %777 = vmatpush.bf16.msra.mxu0 %v623
        %778 = vmatpush.bf16.msra.mxu0 %v619
        %779 = vmatpush.bf16.msra.mxu0 %v615
        %780 = vmatpush.bf16.msra.mxu0 %v611
        %781 = vmatpush.bf16.msra.mxu0 %v607
        %782 = vmatpush.bf16.msra.mxu0 %v603
        %783 = vmatpush.bf16.msra.mxu0 %v599
        %784 = vmatpush.bf16.msra.mxu0 %v595
        %785 = vmatmul.bf16.gmra.mxu0 %v397
        %v786 = vpop.f32.mrf.mxu0
        %v787 = vadd.f32 0.0, %v786
        %v788 = vpop.f32.mrf.mxu0
        %v789 = vadd.f32 0.0, %v788
        %790 = vdwg.mxu0
        %791 = vmatpush.bf16.msra.mxu0 %v655
        %792 = vmatpush.bf16.msra.mxu0 %v651
        %793 = vmatpush.bf16.msra.mxu0 %v647
        %794 = vmatpush.bf16.msra.mxu0 %v643
        %795 = vmatpush.bf16.msra.mxu0 %v639
        %796 = vmatpush.bf16.msra.mxu0 %v635
        %797 = vmatpush.bf16.msra.mxu0 %v631
        %798 = vmatpush.bf16.msra.mxu0 %v627
        %799 = vmatmul.bf16.gmra.mxu0 %v398
        %v800 = vpop.f32.mrf.mxu0
        %v801 = vadd.f32 %v787, %v800
        %v802 = vpop.f32.mrf.mxu0
        %v803 = vadd.f32 %v789, %v802
        %804 = vdwg.mxu0
        %805 = vmatpush.bf16.msra.mxu0 %v624
        %806 = vmatpush.bf16.msra.mxu0 %v620
        %807 = vmatpush.bf16.msra.mxu0 %v616
        %808 = vmatpush.bf16.msra.mxu0 %v612
        %809 = vmatpush.bf16.msra.mxu0 %v608
        %810 = vmatpush.bf16.msra.mxu0 %v604
        %811 = vmatpush.bf16.msra.mxu0 %v600
        %812 = vmatpush.bf16.msra.mxu0 %v596
        %813 = vmatmul.bf16.gmra.mxu0 %v397
        %v814 = vpop.f32.mrf.mxu0
        %v815 = vadd.f32 0.0, %v814
        %v816 = vpop.f32.mrf.mxu0
        %v817 = vadd.f32 0.0, %v816
        %818 = vdwg.mxu0
        %819 = vmatpush.bf16.msra.mxu0 %v656
        %820 = vmatpush.bf16.msra.mxu0 %v652
        %821 = vmatpush.bf16.msra.mxu0 %v648
        %822 = vmatpush.bf16.msra.mxu0 %v644
        %823 = vmatpush.bf16.msra.mxu0 %v640
        %824 = vmatpush.bf16.msra.mxu0 %v636
        %825 = vmatpush.bf16.msra.mxu0 %v632
        %826 = vmatpush.bf16.msra.mxu0 %v628
        %827 = vmatmul.bf16.gmra.mxu0 %v398
        %v828 = vpop.f32.mrf.mxu0
        %v829 = vadd.f32 %v815, %v828
        %v830 = vpop.f32.mrf.mxu0
        %v831 = vadd.f32 %v817, %v830
        %832 = vdwg.mxu0
        %v835 = vunpack.c.l.b16 %v325
        %v836 = vunpack.c.l.b16 %v326
        %v837 = vpack.c.b16 %v836, %v835
        %vm838 = vcmask 130048
        %v840 = vsel %vm838, %v837, 0
        %842 = vmatpush.bf16.msra.mxu0 0
        %843 = vmatpush.bf16.msra.mxu0 0
        %844 = vmatpush.bf16.msra.mxu0 0
        %845 = vmatpush.bf16.msra.mxu0 0
        %846 = vmatpush.bf16.msra.mxu0 0
        %847 = vmatpush.bf16.msra.mxu0 0
        %848 = vmatpush.bf16.msra.mxu0 0
        %849 = vmatpush.bf16.msra.mxu0 %v316
        %850 = vmatmul.bf16.gmra.mxu0 %v840
        %v851 = vpop.f32.mrf.mxu0
        %v852 = vadd.f32 %v745, %v851
        %v853 = vpop.f32.mrf.mxu0
        %v854 = vadd.f32 %v747, %v853
        %855 = vdwg.mxu0
        %856 = vmatpush.bf16.msra.mxu0 0
        %857 = vmatpush.bf16.msra.mxu0 0
        %858 = vmatpush.bf16.msra.mxu0 0
        %859 = vmatpush.bf16.msra.mxu0 0
        %860 = vmatpush.bf16.msra.mxu0 0
        %861 = vmatpush.bf16.msra.mxu0 0
        %862 = vmatpush.bf16.msra.mxu0 0
        %863 = vmatpush.bf16.msra.mxu0 %v317
        %864 = vmatmul.bf16.gmra.mxu0 %v840
        %v865 = vpop.f32.mrf.mxu0
        %v866 = vadd.f32 %v773, %v865
        %v867 = vpop.f32.mrf.mxu0
        %v868 = vadd.f32 %v775, %v867
        %869 = vdwg.mxu0
        %870 = vmatpush.bf16.msra.mxu0 0
        %871 = vmatpush.bf16.msra.mxu0 0
        %872 = vmatpush.bf16.msra.mxu0 0
        %873 = vmatpush.bf16.msra.mxu0 0
        %874 = vmatpush.bf16.msra.mxu0 0
        %875 = vmatpush.bf16.msra.mxu0 0
        %876 = vmatpush.bf16.msra.mxu0 0
        %877 = vmatpush.bf16.msra.mxu0 %v318
        %878 = vmatmul.bf16.gmra.mxu0 %v840
        %v879 = vpop.f32.mrf.mxu0
        %v880 = vadd.f32 %v801, %v879
        %v881 = vpop.f32.mrf.mxu0
        %v882 = vadd.f32 %v803, %v881
        %883 = vdwg.mxu0
        %884 = vmatpush.bf16.msra.mxu0 0
        %885 = vmatpush.bf16.msra.mxu0 0
        %886 = vmatpush.bf16.msra.mxu0 0
        %887 = vmatpush.bf16.msra.mxu0 0
        %888 = vmatpush.bf16.msra.mxu0 0
        %889 = vmatpush.bf16.msra.mxu0 0
        %890 = vmatpush.bf16.msra.mxu0 0
        %891 = vmatpush.bf16.msra.mxu0 %v319
        %892 = vmatmul.bf16.gmra.mxu0 %v840
        %v893 = vpop.f32.mrf.mxu0
        %v894 = vadd.f32 %v829, %v893
        %v895 = vpop.f32.mrf.mxu0
        %v896 = vadd.f32 %v831, %v895
        %897 = vdwg.mxu0
        %v898 = vld [vmem:[%s4] sm:$0xff]
        %v899 = vld [vmem:[%s4 + $0x8] sm:$0xff]
        %901 = vset.pattern.permute.xlu0 0
        %902 = vperm.xlu0 %901, %v898
        %v903 = vpop.permute.xlu0 %902
        %906 = vset.pattern.permute.xlu0 0
        %907 = vperm.xlu0 %906, %v899
        %v908 = vpop.permute.xlu0 %907
        %v910 = vadd.f32 %v852, %v903
        %v911 = vadd.f32 %v866, %v903
        %v912 = vadd.f32 %v880, %v903
        %v913 = vadd.f32 %v894, %v903
        %v914 = vadd.f32 %v854, %v908
        %v915 = vadd.f32 %v868, %v908
        %v916 = vadd.f32 %v882, %v908
        %v917 = vadd.f32 %v896, %v908
        %v918 = vpack.c.bf16 %v911, %v910
        %v919 = vpack.c.bf16 %v913, %v912
        %v920 = vpack.c.bf16 %v915, %v914
        %v921 = vpack.c.bf16 %v917, %v916
        %922 = vst [vmem:[%s303] sm:$0xff] %v918
        %923 = vst [vmem:[%s303 + $0x8] sm:$0xff] %v919
        %924 = vst [vmem:[%s303 + $0x10] sm:$0xff] %v920
        %925 = vst [vmem:[%s303 + $0x18] sm:$0xff] %v921
        %s926 = sand.u32 %s162, 1
        %s927 = scalar_lea.sflag [#allocation4], %s926
        %s928 = sand.u32 %s162, 1
        %s929 = smul.addr %s928, 32
        %s930 = scalar_lea.vmem [#allocation8], %s929
        // Predicated region
        $region53: #{tpu_custom_call.1} parent=39 // pred_check
          %p931 = pneg %p172
        $region54: #{tpu_custom_call.1} parent=39 // pred_check_branch
          %933 = sbr.rel (%p931) target = $region56
        $region55: #{tpu_custom_call.1} parent=39 // pred_region
          %s934 = smul.u32 4, %s28
          %936 = vsyncadd %s927, 0
          %s937 = smul.addr %s27, 8
          %s938 = sadd.s32 %s934, %s937
          %s939 = smul.addr %s938, 4
          %s940 = scalar_lea.hbm %s5, %s939
          %s941 = sshll.u32 %s930, 4
          %s942 = int_to_ptr.vmem [resolvable:$true] %s941
          %s943 = sshll.u32 %s940, 4
          %s944 = int_to_ptr.hbm [resolvable:$true] %s943
          %949 = dma.vmem_to_hbm [thread:$0]  %s942, 512, %s944, %s927, 256, 256, 16
        $region56: #{tpu_custom_call.1} parent=39 // pred_fallthru
          _
      $region40: #{tpu_custom_call.1} parent=5 // pred_fallthru
        _
      %p950 = scmp.le.s32.totalorder 2, %s18
      // Predicated region
      $region57: #{tpu_custom_call.1} parent=5 // pred_check
        %p951 = pneg %p950
      $region58: #{tpu_custom_call.1} parent=5 // pred_check_branch
        %953 = sbr.rel (%p951) target = $region60
      $region59: #{tpu_custom_call.1} parent=5 // pred_region
        %s954 = ssub.s32 %s18, 2
        // Predicated region
        $region61: #{tpu_custom_call.1} parent=59 // pred_check
          %p955 = pneg %p178
        $region62: #{tpu_custom_call.1} parent=59 // pred_check_branch
          %957 = sbr.rel (%p955) target = $region64
        $region63: #{tpu_custom_call.1} parent=59 // pred_region
          %s958 = sand.u32 %s163, 1
          %s959 = scalar_lea.sflag [#allocation4], %s958
          %s960 = sand.u32 %s163, 1
          %s961 = smul.addr %s960, 32
          %s962 = scalar_lea.vmem [#allocation8], %s961
          %964 = dma.done %s959, 512
        $region64: #{tpu_custom_call.1} parent=59 // pred_fallthru
          _
      $region60: #{tpu_custom_call.1} parent=5 // pred_fallthru
        _
    $region6: #{tpu_custom_call.1} parent=1 // loop_footer
      %s22 = sadd.s32 1, %s18
    $region7: #{tpu_custom_call.1} parent=1 // loop_footer_branch
      %17 = sbr.rel target = $region3
    $region8: #{tpu_custom_call.1} parent=1 // loop_exit
      _
    %965 = vsyncpa [#allocation3], 1
    %s966 = scalar_lea.sflag [#allocation3], 1
    %967 = vsyncpa %s966, 1
    %968 = vsyncpa [#allocation6], 1
    %969 = vsyncpa [#allocation4], 1
    %s970 = scalar_lea.sflag [#allocation4], 1
    %971 = vsyncpa %s970, 1

</llo_original>
